<compile_context>
chip_gen: v7x
topology: tpu7x:2x2x1
jax: 0.10.0
libtpu: 0.0.40
codegen_flags: <defaults>
</compile_context>

<pallas_src>
from typing import NamedTuple

import jax
import jax.numpy as jnp
from jax.experimental import pallas as pl
from jax.experimental.pallas import tpu as pltpu


def _round_up(x: int, m: int) -> int:
    return (x + m - 1) // m * m


def _vmem_limit_bytes() -> int:
    # Leave headroom for DMA buffers / scratch; cap at 100 MiB (v5e/v6e have
    # 128 MiB physical VMEM, v7x has 64 MiB so 3/4 of capacity is safe there).
    try:
        cap = pltpu.get_tpu_info().vmem_capacity_bytes
        return int(min(cap * 3 // 4, 100 << 20))
    except Exception:
        # Conservative fallback (safe on every generation, incl. v7x's 64 MiB).
        return 48 << 20


# ---------------------------------------------------------------------------
# Kernels
# ---------------------------------------------------------------------------

def _head_kernel_resident(x_ref, w1_ref, b1_ref, w2_ref, o_ref):
    # x_ref : [TB, Dp]  native-dtype features (batch tile, pipelined)
    # w1_ref: [Dp, Dp]  bf16 first linear weight (resident)
    # b1_ref: [1,  Dp]  f32 first linear bias   (resident)
    # w2_ref: [Dp, Cp]  bf16 second linear weight (resident, no bias)
    # o_ref : [TB, Cp]  logits
    x = x_ref[...].astype(jnp.bfloat16)            # cast on-chip (VPU), not in HBM
    h = jnp.dot(x, w1_ref[...], preferred_element_type=jnp.float32) + b1_ref[...]
    # LeakyReLU, default negative_slope = 0.01 (matches nn.LeakyReLU()).
    h = jnp.where(h > 0, h, jnp.float32(0.01) * h)
    out = jnp.dot(h.astype(w2_ref.dtype), w2_ref[...],
                  preferred_element_type=jnp.float32)
    o_ref[...] = out.astype(o_ref.dtype)


def _head_kernel_ktiled(x_ref, w1_ref, b1_ref, w2_ref, o_ref, acc_ref):
    # Grid = (batch_tiles, k_tiles); the K axis is the innermost "arbitrary"
    # reduction axis of the first matmul.  acc_ref: [TB, Dp] f32 scratch.
    k = pl.program_id(1)

    @pl.when(k == 0)
    def _():
        acc_ref[...] = jnp.zeros_like(acc_ref)

    x = x_ref[...].astype(jnp.bfloat16)
    acc_ref[...] += jnp.dot(x, w1_ref[...], preferred_element_type=jnp.float32)

    @pl.when(k == pl.num_programs(1) - 1)
    def _():
        h = acc_ref[...] + b1_ref[...]
        h = jnp.where(h > 0, h, jnp.float32(0.01) * h)
        out = jnp.dot(h.astype(w2_ref.dtype), w2_ref[...],
                      preferred_element_type=jnp.float32)
        o_ref[...] = out.astype(o_ref.dtype)


# ---------------------------------------------------------------------------
# Parameter preparation (do once at load time; padded/bf16 weights are cached)
# ---------------------------------------------------------------------------

class HeadParams(NamedTuple):
    w1: jax.Array   # [Dp, Dp] bf16
    b1: jax.Array   # [1,  Dp] f32
    w2: jax.Array   # [Dp, Cp] bf16
    d: int          # original intern_dim
    c: int          # original num_classes


def prepare_head_params(w1, b1, w2) -> HeadParams:
    """w1: [D, D]; b1: [D]; w2: [D, C] (already laid out as x @ W)."""
    D = w1.shape[0]
    C = w2.shape[1]
    Dp = _round_up(D, 128)
    Cp = _round_up(C, 128)
    w1p = jnp.pad(w1.astype(jnp.bfloat16), ((0, Dp - D), (0, Dp - D)))
    b1p = jnp.pad(b1.astype(jnp.float32).reshape(1, D), ((0, 0), (0, Dp - D)))
    w2p = jnp.pad(w2.astype(jnp.bfloat16), ((0, Dp - D), (0, Cp - C)))
    return HeadParams(w1p, b1p, w2p, D, C)


# ---------------------------------------------------------------------------
# Forward
# ---------------------------------------------------------------------------

def passive_classification_head(x, params: HeadParams, *, block_b: int = 256,
                                block_k: int = 512,
                                out_dtype=jnp.float32,
                                force_k_tiling: bool = False):
    """x: [B, D] features (native dtype); params from prepare_head_params().

    Returns [B, C] logits in `out_dtype` (default f32 to match PyTorch)."""
    B, D = x.shape
    assert D == params.d, f"feature dim {D} != prepared intern_dim {params.d}"
    C = params.c
    Dp = params.w1.shape[0]
    Cp = params.w2.shape[1]

    # Pad the feature axis only when D is not lane-aligned (native dtype; the
    # kernel does the bf16 cast on-chip).  No batch padding: the cdiv grid
    # masks the boundary block's writes.
    if Dp != D:
        x = jnp.pad(x, ((0, 0), (0, Dp - D)))

    # Batch tile: multiple of 16 (bf16 sublane packing), sized so the grid has
    # >=2 steps whenever B allows (v7x 2-TC megacore + pipelining), capped at
    # block_b (default 256 = full MXU M width on v6e/v7x).
    TB = max(16, min(block_b, _round_up(pl.cdiv(B, 2), 16)))
    nb = pl.cdiv(B, TB)

    x_bytes = x.dtype.itemsize
    out_bytes = jnp.dtype(out_dtype).itemsize
    cost = pl.CostEstimate(
        flops=2 * B * D * (D + C),
        transcendentals=0,
        bytes_accessed=(B * Dp * x_bytes + Dp * Dp * 2 + Dp * 4
                        + Dp * Cp * 2 + B * Cp * out_bytes),
    )

    # Resident W1 (single-buffered) above ~24 MiB will not fit v7x's 64 MiB
    # VMEM together with the rest -> switch to the K-tiled reduction path.
    use_k_tiling = force_k_tiling or (Dp * Dp * 2 > (24 << 20))

    def build(single_buffer_weights: bool):
        resident_kw = {}
        if single_buffer_weights and hasattr(pl, "Buffered"):
            # Constant index_map => no overlap needed; halves resident VMEM.
            resident_kw = dict(pipeline_mode=pl.Buffered(1))

        if not use_k_tiling:
            grid = (nb,)
            in_specs = [
                pl.BlockSpec((TB, Dp), lambda i: (i, 0)),                 # x tile
                pl.BlockSpec((Dp, Dp), lambda i: (0, 0), **resident_kw),  # W1
                pl.BlockSpec((1, Dp), lambda i: (0, 0), **resident_kw),   # b1
                pl.BlockSpec((Dp, Cp), lambda i: (0, 0), **resident_kw),  # W2
            ]
            out_specs = pl.BlockSpec((TB, Cp), lambda i: (i, 0))
            kernel = _head_kernel_resident
            scratch = []
            dims = ("parallel",)
        else:
            TK = min(_round_up(block_k, 128), Dp)
            while Dp % TK != 0:          # Dp, TK are multiples of 128 -> terminates
                TK -= 128
            nk = Dp // TK
            grid = (nb, nk)
            in_specs = [
                pl.BlockSpec((TB, TK), lambda i, k: (i, k)),                 # x K-slab
                pl.BlockSpec((TK, Dp), lambda i, k: (k, 0)),                 # W1 K-slab
                pl.BlockSpec((1, Dp), lambda i, k: (0, 0), **resident_kw),   # b1
                pl.BlockSpec((Dp, Cp), lambda i, k: (0, 0), **resident_kw),  # W2
            ]
            out_specs = pl.BlockSpec((TB, Cp), lambda i, k: (i, 0))
            kernel = _head_kernel_ktiled
            scratch = [pltpu.VMEM((TB, Dp), jnp.float32)]
            dims = ("parallel", "arbitrary")

        return pl.pallas_call(
            kernel,
            out_shape=jax.ShapeDtypeStruct((B, Cp), out_dtype),
            grid=grid,
            in_specs=in_specs,
            out_specs=out_specs,
            scratch_shapes=scratch,
            compiler_params=pltpu.CompilerParams(
                dimension_semantics=dims,
                vmem_limit_bytes=_vmem_limit_bytes(),
            ),
            cost_estimate=cost,
        )

    args = (x, params.w1, params.b1, params.w2)
    try:
        out = build(single_buffer_weights=True)(*args)
    except Exception:
        # pl.Buffered(1) not supported by this jax build -> default buffering.
        out = build(single_buffer_weights=False)(*args)

    if Cp != C:
        out = out[:, :C]
    return out


def reference_head(x, w1, b1, w2):
    h = x @ w1 + b1
    h = jnp.where(h > 0, h, 0.01 * h)
    return h @ w2


if __name__ == "__main__":
    key = jax.random.PRNGKey(0)

    def make_case(k, batch, intern_dim, num_classes):
        k_x, k_w1, k_b1, k_w2 = jax.random.split(k, 4)
        bound = 1.0 / (intern_dim ** 0.5)
        # "model(input)" output — identity backbone: features directly.
        x = jax.random.normal(k_x, (batch, intern_dim), dtype=jnp.float32)
        w1 = jax.random.uniform(k_w1, (intern_dim, intern_dim),
                                minval=-bound, maxval=bound, dtype=jnp.float32)
        b1 = jax.random.uniform(k_b1, (intern_dim,),
                                minval=-bound, maxval=bound, dtype=jnp.float32)
        w2 = jax.random.uniform(k_w2, (intern_dim, num_classes),
                                minval=-bound, maxval=bound, dtype=jnp.float32)
        return x, w1, b1, w2

    k1, k2 = jax.random.split(key)

    # Case 1: resident-weight path; B=8 < TB exercises the masked boundary block.
    x, w1, b1, w2 = make_case(k1, 8, 32, 10)
    params = prepare_head_params(w1, b1, w2)            # done once (cached weights)
    out = jax.block_until_ready(passive_classification_head(x, params))
    ref = reference_head(x, w1, b1, w2)
    assert out.shape == (8, 10)
    assert jnp.allclose(out, ref, atol=5e-2, rtol=5e-2), "resident path mismatch"

    # Case 2: K-tiled reduction path (forced), B not a multiple of the batch tile.
    x, w1, b1, w2 = make_case(k2, 24, 256, 10)
    params = prepare_head_params(w1, b1, w2)
    out = jax.block_until_ready(
        passive_classification_head(x, params, block_k=128, force_k_tiling=True))
    ref = reference_head(x, w1, b1, w2)
    assert out.shape == (24, 10)
    assert jnp.allclose(out, ref, atol=5e-2, rtol=5e-2), "K-tiled path mismatch"

    print("KERNEL_OK")
</pallas_src>

<mosaic_0001>
module attributes {stable_mosaic.version = 11 : i64} {
  func.func @_head_kernel_resident(%arg0: i32, %arg1: memref<16x128xf32, #tpu.memory_space<vmem>>, %arg2: memref<128x128xbf16, #tpu.memory_space<vmem>>, %arg3: memref<1x128xf32, #tpu.memory_space<vmem>>, %arg4: memref<128x128xbf16, #tpu.memory_space<vmem>>, %arg5: memref<16x128xf32, #tpu.memory_space<vmem>>) attributes {dimension_semantics = [#tpu.dimension_semantics<parallel>], iteration_bounds = array<i64: 1>, scalar_prefetch = 0 : i64, scratch_operands = 0 : i64, tpu.core_type = #tpu.core_type<tc>, window_params = [{transform_indices = @transform_0, window_bounds = array<i64: 16, 128>}, {pipeline_mode = #tpu.pipeline_mode<synchronous>, transform_indices = @transform_1, window_bounds = array<i64: 128, 128>}, {pipeline_mode = #tpu.pipeline_mode<synchronous>, transform_indices = @transform_2, window_bounds = array<i64: 1, 128>}, {pipeline_mode = #tpu.pipeline_mode<synchronous>, transform_indices = @transform_3, window_bounds = array<i64: 128, 128>}, {transform_indices = @transform_4, window_bounds = array<i64: 16, 128>}]} {
    %c0 = arith.constant 0 : index
    %c0_0 = arith.constant 0 : index
    %0 = vector.load %arg1[%c0, %c0_0] : memref<16x128xf32, #tpu.memory_space<vmem>>, vector<16x128xf32>
    %1 = arith.truncf %0 : vector<16x128xf32> to vector<16x128xbf16>
    %c0_1 = arith.constant 0 : index
    %c0_2 = arith.constant 0 : index
    %2 = vector.load %arg2[%c0_1, %c0_2] : memref<128x128xbf16, #tpu.memory_space<vmem>>, vector<128x128xbf16>
    %cst = arith.constant dense<0.000000e+00> : vector<16x128xf32>
    %3 = tpu.matmul %1, %2, %cst {dimension_numbers = #tpu.dot_dimension_numbers<[1], [0], [0], [1], [0, 0, 1, 1], [], []>} : vector<16x128xbf16>, vector<128x128xbf16>, vector<16x128xf32> -> vector<16x128xf32>
    %c0_3 = arith.constant 0 : index
    %c0_4 = arith.constant 0 : index
    %4 = vector.load %arg3[%c0_3, %c0_4] : memref<1x128xf32, #tpu.memory_space<vmem>>, vector<1x128xf32>
    %5 = vector.broadcast %4 : vector<1x128xf32> to vector<16x128xf32>
    %6 = arith.addf %3, %5 : vector<16x128xf32>
    %cst_5 = arith.constant 0.000000e+00 : f32
    %7 = vector.broadcast %cst_5 : f32 to vector<16x128xf32>
    %8 = arith.cmpf ogt, %6, %7 : vector<16x128xf32>
    %cst_6 = arith.constant 0.00999999977 : f32
    %9 = vector.broadcast %cst_6 : f32 to vector<16x128xf32>
    %10 = arith.mulf %9, %6 : vector<16x128xf32>
    %11 = arith.select %8, %6, %10 : vector<16x128xi1>, vector<16x128xf32>
    %12 = arith.truncf %11 : vector<16x128xf32> to vector<16x128xbf16>
    %c0_7 = arith.constant 0 : index
    %c0_8 = arith.constant 0 : index
    %13 = vector.load %arg4[%c0_7, %c0_8] : memref<128x128xbf16, #tpu.memory_space<vmem>>, vector<128x128xbf16>
    %cst_9 = arith.constant dense<0.000000e+00> : vector<16x128xf32>
    %14 = tpu.matmul %12, %13, %cst_9 {dimension_numbers = #tpu.dot_dimension_numbers<[1], [0], [0], [1], [0, 0, 1, 1], [], []>} : vector<16x128xbf16>, vector<128x128xbf16>, vector<16x128xf32> -> vector<16x128xf32>
    %c0_10 = arith.constant 0 : index
    %c0_11 = arith.constant 0 : index
    %15 = vector.load %arg5[%c0_10, %c0_11] : memref<16x128xf32, #tpu.memory_space<vmem>>, vector<16x128xf32>
    tpu.vector_store %arg5[%c0_10, %c0_11], %14 {strides = array<i32>} : memref<16x128xf32, #tpu.memory_space<vmem>>, vector<16x128xf32>,
    return
  }
  func.func @transform_0(%arg0: i32) -> (i32, i32) {
    %c0_i32 = arith.constant 0 : i32
    %c0_i32_0 = arith.constant 0 : i32
    return %arg0, %c0_i32 : i32, i32
  }
  func.func @transform_1(%arg0: i32) -> (i32, i32) {
    %c0_i32 = arith.constant 0 : i32
    %c0_i32_0 = arith.constant 0 : i32
    %c0_i32_1 = arith.constant 0 : i32
    return %c0_i32, %c0_i32_0 : i32, i32
  }
  func.func @transform_2(%arg0: i32) -> (i32, i32) {
    %c0_i32 = arith.constant 0 : i32
    %c0_i32_0 = arith.constant 0 : i32
    %c0_i32_1 = arith.constant 0 : i32
    return %c0_i32, %c0_i32_0 : i32, i32
  }
  func.func @transform_3(%arg0: i32) -> (i32, i32) {
    %c0_i32 = arith.constant 0 : i32
    %c0_i32_0 = arith.constant 0 : i32
    %c0_i32_1 = arith.constant 0 : i32
    return %c0_i32, %c0_i32_0 : i32, i32
  }
  func.func @transform_4(%arg0: i32) -> (i32, i32) {
    %c0_i32 = arith.constant 0 : i32
    %c0_i32_0 = arith.constant 0 : i32
    return %arg0, %c0_i32 : i32, i32
  }
}

module attributes {stable_mosaic.version = 11 : i64} {
  func.func @_head_kernel_resident(%arg0: i32, %arg1: memref<16x128xf32, #tpu.memory_space<vmem>>, %arg2: memref<128x128xbf16, #tpu.memory_space<vmem>>, %arg3: memref<1x128xf32, #tpu.memory_space<vmem>>, %arg4: memref<128x128xbf16, #tpu.memory_space<vmem>>, %arg5: memref<16x128xf32, #tpu.memory_space<vmem>>) attributes {dimension_semantics = [#tpu.dimension_semantics<parallel>], iteration_bounds = array<i64: 1>, scalar_prefetch = 0 : i64, scratch_operands = 0 : i64, tpu.core_type = #tpu.core_type<tc>, window_params = [{transform_indices = @transform_0, window_bounds = array<i64: 16, 128>}, {pipeline_mode = #tpu.pipeline_mode<synchronous>, transform_indices = @transform_1, window_bounds = array<i64: 128, 128>}, {pipeline_mode = #tpu.pipeline_mode<synchronous>, transform_indices = @transform_2, window_bounds = array<i64: 1, 128>}, {pipeline_mode = #tpu.pipeline_mode<synchronous>, transform_indices = @transform_3, window_bounds = array<i64: 128, 128>}, {transform_indices = @transform_4, window_bounds = array<i64: 16, 128>}]} {
    %c0 = arith.constant 0 : index
    %c0_0 = arith.constant 0 : index
    %0 = vector.load %arg1[%c0, %c0_0] : memref<16x128xf32, #tpu.memory_space<vmem>>, vector<16x128xf32>
    %1 = arith.truncf %0 : vector<16x128xf32> to vector<16x128xbf16>
    %c0_1 = arith.constant 0 : index
    %c0_2 = arith.constant 0 : index
    %2 = vector.load %arg2[%c0_1, %c0_2] : memref<128x128xbf16, #tpu.memory_space<vmem>>, vector<128x128xbf16>
    %cst = arith.constant dense<0.000000e+00> : vector<16x128xf32>
    %3 = tpu.matmul %1, %2, %cst {dimension_numbers = #tpu.dot_dimension_numbers<[1], [0], [0], [1], [0, 0, 1, 1], [], []>} : vector<16x128xbf16>, vector<128x128xbf16>, vector<16x128xf32> -> vector<16x128xf32>
    %c0_3 = arith.constant 0 : index
    %c0_4 = arith.constant 0 : index
    %4 = vector.load %arg3[%c0_3, %c0_4] : memref<1x128xf32, #tpu.memory_space<vmem>>, vector<1x128xf32>
    %5 = vector.broadcast %4 : vector<1x128xf32> to vector<16x128xf32>
    %6 = arith.addf %3, %5 : vector<16x128xf32>
    %cst_5 = arith.constant 0.000000e+00 : f32
    %7 = vector.broadcast %cst_5 : f32 to vector<16x128xf32>
    %8 = arith.cmpf ogt, %6, %7 : vector<16x128xf32>
    %cst_6 = arith.constant 0.00999999977 : f32
    %9 = vector.broadcast %cst_6 : f32 to vector<16x128xf32>
    %10 = arith.mulf %9, %6 : vector<16x128xf32>
    %11 = arith.select %8, %6, %10 : vector<16x128xi1>, vector<16x128xf32>
    %12 = arith.truncf %11 : vector<16x128xf32> to vector<16x128xbf16>
    %c0_7 = arith.constant 0 : index
    %c0_8 = arith.constant 0 : index
    %13 = vector.load %arg4[%c0_7, %c0_8] : memref<128x128xbf16, #tpu.memory_space<vmem>>, vector<128x128xbf16>
    %cst_9 = arith.constant dense<0.000000e+00> : vector<16x128xf32>
    %14 = tpu.matmul %12, %13, %cst_9 {dimension_numbers = #tpu.dot_dimension_numbers<[1], [0], [0], [1], [0, 0, 1, 1], [], []>} : vector<16x128xbf16>, vector<128x128xbf16>, vector<16x128xf32> -> vector<16x128xf32>
    %c0_10 = arith.constant 0 : index
    %c0_11 = arith.constant 0 : index
    %15 = vector.load %arg5[%c0_10, %c0_11] : memref<16x128xf32, #tpu.memory_space<vmem>>, vector<16x128xf32>
    tpu.vector_store %arg5[%c0_10, %c0_11], %14 {strides = array<i32>} : memref<16x128xf32, #tpu.memory_space<vmem>>, vector<16x128xf32>,
    return
  }
  func.func @transform_0(%arg0: i32) -> (i32, i32) {
    %c0_i32 = arith.constant 0 : i32
    %c0_i32_0 = arith.constant 0 : i32
    return %arg0, %c0_i32 : i32, i32
  }
  func.func @transform_1(%arg0: i32) -> (i32, i32) {
    %c0_i32 = arith.constant 0 : i32
    %c0_i32_0 = arith.constant 0 : i32
    %c0_i32_1 = arith.constant 0 : i32
    return %c0_i32, %c0_i32_0 : i32, i32
  }
  func.func @transform_2(%arg0: i32) -> (i32, i32) {
    %c0_i32 = arith.constant 0 : i32
    %c0_i32_0 = arith.constant 0 : i32
    %c0_i32_1 = arith.constant 0 : i32
    return %c0_i32, %c0_i32_0 : i32, i32
  }
  func.func @transform_3(%arg0: i32) -> (i32, i32) {
    %c0_i32 = arith.constant 0 : i32
    %c0_i32_0 = arith.constant 0 : i32
    %c0_i32_1 = arith.constant 0 : i32
    return %c0_i32, %c0_i32_0 : i32, i32
  }
  func.func @transform_4(%arg0: i32) -> (i32, i32) {
    %c0_i32 = arith.constant 0 : i32
    %c0_i32_0 = arith.constant 0 : i32
    return %arg0, %c0_i32 : i32, i32
  }
}

</mosaic_0001>

<llo_original>
// kernel: tpu_custom_call.1
$region0: #{tpu_custom_call.1}
  #allocation0 [shape = 'u32[]', space=smem, size = 0x4, offset = 0x4, fixed_abs, tag = 'smem constant byte address 0x4 - core index']
  #allocation1 [shape = 'u32[144,128]{1,0:T(1,128)}', space=vmem, size = 0x12000, scoped, tag = 'internal scratch']
  %s0 = inlined_call_operand.hbm [shape: f32[8,128], index: 0, kind: input, shape index: {}]
  %s1 = inlined_call_operand.hbm [shape: bf16[128,128], index: 1, kind: input, shape index: {}]
  %s2 = inlined_call_operand.vmem [shape: f32[1,128], index: 2, kind: input, shape index: {}]
  %s3 = inlined_call_operand.hbm [shape: bf16[128,128], index: 3, kind: input, shape index: {}]
  %s4 = inlined_call_operand.hbm [shape: f32[8,128], index: 4, kind: output, shape index: {}]
  %s5 = sld [smem:[#allocation0]]
  $region38: #{tpu_custom_call.1} parent=0
    _
  %s7 = ssub.s32 1, %s5
  %s8 = scalar_select 0, %s7, %s5
  $region1: #{tpu_custom_call.1} parent=0
    #allocation2 [shape = 'u8[8192]{0}', space=vmem, size = 0x2000, scoped, tag = 'input window, operand 0, single buffered']
    #allocation3 [shape = 's32[1]{0}', space=sflag, size = 0x4, scoped, tag = 'scoped memory for tpu_custom_call.1']
    #allocation4 [shape = 's32[1]{0}', space=sflag, size = 0x4, scoped, tag = 'scoped memory for tpu_custom_call.1']
    #allocation5 [shape = 'u8[32768]{0}', space=vmem, size = 0x8000, scoped, tag = 'input window, operand 1, single buffered']
    #allocation6 [shape = 's32[1]{0}', space=sflag, size = 0x4, scoped, tag = 'scoped memory for tpu_custom_call.1']
    #allocation7 [shape = 'u8[32768]{0}', space=vmem, size = 0x8000, scoped, tag = 'input window, operand 3, single buffered']
    #allocation8 [shape = 'u8[8192]{0}', space=vmem, size = 0x2000, scoped, tag = 'output window, operand 0, single buffered']
    %9 = vsyncpa [#allocation3], 0
    %10 = vsyncpa [#allocation6], 0
    %11 = vsyncpa [#allocation4], 0
    // Predicated region
    $region2: #{tpu_custom_call.1} parent=1 // pred_check
      _
    $region3: #{tpu_custom_call.1} parent=1 // pred_check_branch
      %13 = sbr.rel (0) target = $region5
    $region4: #{tpu_custom_call.1} parent=1 // pred_region
      %s15 = ssub.s32 256, 128
      %16 = vsyncadd [#allocation3], %s15
      %s17 = sshll.u32 [#allocation2], 4
      %s18 = int_to_ptr.vmem [resolvable:$true] %s17
      %23 = dma.hbm_to_vmem [thread:$0]  %s0, 128, %s18, [#allocation3], 128, 128, 8
    $region5: #{tpu_custom_call.1} parent=1 // pred_fallthru
      _
    // Predicated region
    $region6: #{tpu_custom_call.1} parent=1 // pred_check
      _
    $region7: #{tpu_custom_call.1} parent=1 // pred_check_branch
      %25 = sbr.rel (0) target = $region9
    $region8: #{tpu_custom_call.1} parent=1 // pred_region
      %s27 = ssub.s32 1024, 1024
      %28 = vsyncadd [#allocation6], %s27
      %s29 = sshll.u32 [#allocation5], 4
      %s30 = int_to_ptr.vmem [resolvable:$true] %s29
      %35 = dma.hbm_to_vmem [thread:$0]  %s1, 1024, %s30, [#allocation6], 64, 64, 4
    $region9: #{tpu_custom_call.1} parent=1 // pred_fallthru
      _
    // Predicated region
    $region10: #{tpu_custom_call.1} parent=1 // pred_check
      _
    $region11: #{tpu_custom_call.1} parent=1 // pred_check_branch
      %37 = sbr.rel (0) target = $region13
    $region12: #{tpu_custom_call.1} parent=1 // pred_region
      _
    $region13: #{tpu_custom_call.1} parent=1 // pred_fallthru
      _
    // Predicated region
    $region14: #{tpu_custom_call.1} parent=1 // pred_check
      _
    $region15: #{tpu_custom_call.1} parent=1 // pred_check_branch
      %39 = sbr.rel (0) target = $region17
    $region16: #{tpu_custom_call.1} parent=1 // pred_region
      %s41 = ssub.s32 1024, 1024
      %42 = vsyncadd [#allocation6], %s41
      %s43 = sshll.u32 [#allocation7], 4
      %s44 = int_to_ptr.vmem [resolvable:$true] %s43
      %49 = dma.hbm_to_vmem [thread:$0]  %s3, 1024, %s44, [#allocation6], 64, 64, 4
    $region17: #{tpu_custom_call.1} parent=1 // pred_fallthru
      _
    // Predicated region
    $region18: #{tpu_custom_call.1} parent=1 // pred_check
      _
    $region19: #{tpu_custom_call.1} parent=1 // pred_check_branch
      %51 = sbr.rel (0) target = $region21
    $region20: #{tpu_custom_call.1} parent=1 // pred_region
      %52 = dma.done [#allocation3], 256
    $region21: #{tpu_custom_call.1} parent=1 // pred_fallthru
      _
    // Predicated region
    $region22: #{tpu_custom_call.1} parent=1 // pred_check
      _
    $region23: #{tpu_custom_call.1} parent=1 // pred_check_branch
      %54 = sbr.rel (0) target = $region25
    $region24: #{tpu_custom_call.1} parent=1 // pred_region
      %55 = dma.done [#allocation6], 1024
    $region25: #{tpu_custom_call.1} parent=1 // pred_fallthru
      _
    // Predicated region
    $region26: #{tpu_custom_call.1} parent=1 // pred_check
      _
    $region27: #{tpu_custom_call.1} parent=1 // pred_check_branch
      %57 = sbr.rel (0) target = $region29
    $region28: #{tpu_custom_call.1} parent=1 // pred_region
      %58 = dma.done [#allocation6], 1024
    $region29: #{tpu_custom_call.1} parent=1 // pred_fallthru
      _
    %v60 = vld [vmem:[#allocation2] sm:$0xff]
    %v61 = vld [vmem:[#allocation2 + $0x8] sm:$0xff]
    %v62 = vpack.c.bf16 %v61, %v60
    %v63 = vld [vmem:[#allocation5] sm:$0xf]
    %v64 = vld [vmem:[#allocation5 + $0x4] sm:$0xf]
    %v65 = vld [vmem:[#allocation5 + $0x8] sm:$0xf]
    %v66 = vld [vmem:[#allocation5 + $0xc] sm:$0xf]
    %v67 = vld [vmem:[#allocation5 + $0x10] sm:$0xf]
    %v68 = vld [vmem:[#allocation5 + $0x14] sm:$0xf]
    %v69 = vld [vmem:[#allocation5 + $0x18] sm:$0xf]
    %v70 = vld [vmem:[#allocation5 + $0x1c] sm:$0xf]
    %v71 = vld [vmem:[#allocation5 + $0x20] sm:$0xf]
    %v72 = vld [vmem:[#allocation5 + $0x24] sm:$0xf]
    %v73 = vld [vmem:[#allocation5 + $0x28] sm:$0xf]
    %v74 = vld [vmem:[#allocation5 + $0x2c] sm:$0xf]
    %v75 = vld [vmem:[#allocation5 + $0x30] sm:$0xf]
    %v76 = vld [vmem:[#allocation5 + $0x34] sm:$0xf]
    %v77 = vld [vmem:[#allocation5 + $0x38] sm:$0xf]
    %v78 = vld [vmem:[#allocation5 + $0x3c] sm:$0xf]
    %v79 = vld [vmem:[%s2] sm:$0x1]
    %v81 = vlaneseq
    %v82 = vshrl.u32 %v81, 7
    %v83 = vsub.s32 0, %v82
    %v84 = vrot.slane %v79, %v83
    %v102 = vunpack.c.l.b16 %v63
    %v103 = vunpack.c.l.b16 %v64
    %v104 = vunpack.c.l.b16 %v65
    %v105 = vunpack.c.l.b16 %v66
    %v106 = vunpack.c.l.b16 %v67
    %v107 = vunpack.c.l.b16 %v68
    %v108 = vunpack.c.l.b16 %v69
    %v109 = vunpack.c.l.b16 %v70
    %v110 = vunpack.c.l.b16 %v71
    %v111 = vunpack.c.l.b16 %v72
    %v112 = vunpack.c.l.b16 %v73
    %v113 = vunpack.c.l.b16 %v74
    %v114 = vunpack.c.l.b16 %v75
    %v115 = vunpack.c.l.b16 %v76
    %v116 = vunpack.c.l.b16 %v77
    %v117 = vunpack.c.l.b16 %v78
    %v118 = vpack.c.b16 %v103, %v102
    %v119 = vpack.c.b16 %v105, %v104
    %v120 = vpack.c.b16 %v107, %v106
    %v121 = vpack.c.b16 %v109, %v108
    %v122 = vpack.c.b16 %v111, %v110
    %v123 = vpack.c.b16 %v113, %v112
    %v124 = vpack.c.b16 %v115, %v114
    %v125 = vpack.c.b16 %v117, %v116
    %134 = vmatprep.subr.bf16.mxu0 0
    %135 = vmatpush1.bf16.msra.mxu0 %v118
    %136 = vmatprep.subr.bf16.mxu0 0
    %137 = vmatpush1.bf16.msra.mxu0 %v119
    %138 = vmatprep.subr.bf16.mxu0 0
    %139 = vmatpush1.bf16.msra.mxu0 %v120
    %140 = vmatprep.subr.bf16.mxu0 0
    %141 = vmatpush1.bf16.msra.mxu0 %v121
    %142 = vmatprep.subr.bf16.mxu0 0
    %143 = vmatpush1.bf16.msra.mxu0 %v122
    %144 = vmatprep.subr.bf16.mxu0 0
    %145 = vmatpush1.bf16.msra.mxu0 %v123
    %146 = vmatprep.subr.bf16.mxu0 0
    %147 = vmatpush1.bf16.msra.mxu0 %v124
    %148 = vmatprep.subr.bf16.mxu0 0
    %149 = vmatpush1.bf16.msra.mxu0 %v125
    %150 = vmatprep.subr.bf16.mxu0 0
    %151 = vmatpush1.bf16.msra.mxu0 0
    %152 = vmatprep.subr.bf16.mxu0 0
    %153 = vmatpush1.bf16.msra.mxu0 0
    %154 = vmatprep.subr.bf16.mxu0 0
    %155 = vmatpush1.bf16.msra.mxu0 0
    %156 = vmatprep.subr.bf16.mxu0 0
    %157 = vmatpush1.bf16.msra.mxu0 0
    %158 = vmatprep.subr.bf16.mxu0 0
    %159 = vmatpush1.bf16.msra.mxu0 0
    %160 = vmatprep.subr.bf16.mxu0 0
    %161 = vmatpush1.bf16.msra.mxu0 0
    %162 = vmatprep.subr.bf16.mxu0 0
    %163 = vmatpush1.bf16.msra.mxu0 0
    %164 = vmatprep.subr.bf16.mxu0 0
    %165 = vmatpush1.bf16.msra.mxu0 0
    %166 = vmatprep.mubr.bf16.mxu0 0
    %167 = vmatmul.mubr.bf16.gmra.mrb[0].mxu0 %v62
    %v168 = vpop.f32.mrb[0].mxu0
    %v169 = vadd.f32 %v84, %v168
    %v170 = vpop.f32.mrb[0].mxu0
    %v171 = vpop.f32.mrb[0].mxu0
    %v172 = vadd.f32 %v84, %v171
    %v173 = vpop.f32.mrb[0].mxu0
    %174 = vdwg.mxu0
    %vm175 = vcmp.gt.f32.partialorder %v169, 0.0
    %vm176 = vcmp.gt.f32.partialorder %v172, 0.0
    %v177 = vmul.f32 %v169, 0.01
    %v178 = vmul.f32 %v172, 0.01
    %v179 = vsel %vm175, %v169, %v177
    %v180 = vsel %vm176, %v172, %v178
    %v181 = vpack.c.bf16 %v180, %v179
    %v182 = vld [vmem:[#allocation7] sm:$0xf]
    %v183 = vld [vmem:[#allocation7 + $0x4] sm:$0xf]
    %v184 = vld [vmem:[#allocation7 + $0x8] sm:$0xf]
    %v185 = vld [vmem:[#allocation7 + $0xc] sm:$0xf]
    %v186 = vld [vmem:[#allocation7 + $0x10] sm:$0xf]
    %v187 = vld [vmem:[#allocation7 + $0x14] sm:$0xf]
    %v188 = vld [vmem:[#allocation7 + $0x18] sm:$0xf]
    %v189 = vld [vmem:[#allocation7 + $0x1c] sm:$0xf]
    %v190 = vld [vmem:[#allocation7 + $0x20] sm:$0xf]
    %v191 = vld [vmem:[#allocation7 + $0x24] sm:$0xf]
    %v192 = vld [vmem:[#allocation7 + $0x28] sm:$0xf]
    %v193 = vld [vmem:[#allocation7 + $0x2c] sm:$0xf]
    %v194 = vld [vmem:[#allocation7 + $0x30] sm:$0xf]
    %v195 = vld [vmem:[#allocation7 + $0x34] sm:$0xf]
    %v196 = vld [vmem:[#allocation7 + $0x38] sm:$0xf]
    %v197 = vld [vmem:[#allocation7 + $0x3c] sm:$0xf]
    %v214 = vunpack.c.l.b16 %v182
    %v215 = vunpack.c.l.b16 %v183
    %v216 = vunpack.c.l.b16 %v184
    %v217 = vunpack.c.l.b16 %v185
    %v218 = vunpack.c.l.b16 %v186
    %v219 = vunpack.c.l.b16 %v187
    %v220 = vunpack.c.l.b16 %v188
    %v221 = vunpack.c.l.b16 %v189
    %v222 = vunpack.c.l.b16 %v190
    %v223 = vunpack.c.l.b16 %v191
    %v224 = vunpack.c.l.b16 %v192
    %v225 = vunpack.c.l.b16 %v193
    %v226 = vunpack.c.l.b16 %v194
    %v227 = vunpack.c.l.b16 %v195
    %v228 = vunpack.c.l.b16 %v196
    %v229 = vunpack.c.l.b16 %v197
    %v230 = vpack.c.b16 %v215, %v214
    %v231 = vpack.c.b16 %v217, %v216
    %v232 = vpack.c.b16 %v219, %v218
    %v233 = vpack.c.b16 %v221, %v220
    %v234 = vpack.c.b16 %v223, %v222
    %v235 = vpack.c.b16 %v225, %v224
    %v236 = vpack.c.b16 %v227, %v226
    %v237 = vpack.c.b16 %v229, %v228
    %246 = vmatprep.subr.bf16.mxu0 0
    %247 = vmatpush1.bf16.msra.mxu0 %v230
    %248 = vmatprep.subr.bf16.mxu0 0
    %249 = vmatpush1.bf16.msra.mxu0 %v231
    %250 = vmatprep.subr.bf16.mxu0 0
    %251 = vmatpush1.bf16.msra.mxu0 %v232
    %252 = vmatprep.subr.bf16.mxu0 0
    %253 = vmatpush1.bf16.msra.mxu0 %v233
    %254 = vmatprep.subr.bf16.mxu0 0
    %255 = vmatpush1.bf16.msra.mxu0 %v234
    %256 = vmatprep.subr.bf16.mxu0 0
    %257 = vmatpush1.bf16.msra.mxu0 %v235
    %258 = vmatprep.subr.bf16.mxu0 0
    %259 = vmatpush1.bf16.msra.mxu0 %v236
    %260 = vmatprep.subr.bf16.mxu0 0
    %261 = vmatpush1.bf16.msra.mxu0 %v237
    %262 = vmatprep.subr.bf16.mxu0 0
    %263 = vmatpush1.bf16.msra.mxu0 0
    %264 = vmatprep.subr.bf16.mxu0 0
    %265 = vmatpush1.bf16.msra.mxu0 0
    %266 = vmatprep.subr.bf16.mxu0 0
    %267 = vmatpush1.bf16.msra.mxu0 0
    %268 = vmatprep.subr.bf16.mxu0 0
    %269 = vmatpush1.bf16.msra.mxu0 0
    %270 = vmatprep.subr.bf16.mxu0 0
    %271 = vmatpush1.bf16.msra.mxu0 0
    %272 = vmatprep.subr.bf16.mxu0 0
    %273 = vmatpush1.bf16.msra.mxu0 0
    %274 = vmatprep.subr.bf16.mxu0 0
    %275 = vmatpush1.bf16.msra.mxu0 0
    %276 = vmatprep.subr.bf16.mxu0 0
    %277 = vmatpush1.bf16.msra.mxu0 0
    %278 = vmatprep.mubr.bf16.mxu0 0
    %279 = vmatmul.mubr.bf16.gmra.mrb[0].mxu0 %v181
    %v280 = vpop.f32.mrb[0].mxu0
    %v281 = vadd.f32 0.0, %v280
    %v282 = vpop.f32.mrb[0].mxu0
    %v283 = vpop.f32.mrb[0].mxu0
    %v284 = vadd.f32 0.0, %v283
    %v285 = vpop.f32.mrb[0].mxu0
    %286 = vdwg.mxu0
    %287 = vst [vmem:[#allocation8] sm:$0xff] %v281
    %288 = vst [vmem:[#allocation8 + $0x8] sm:$0xff] %v284
    // Predicated region
    $region30: #{tpu_custom_call.1} parent=1 // pred_check
      _
    $region31: #{tpu_custom_call.1} parent=1 // pred_check_branch
      %290 = sbr.rel (0) target = $region33
    $region32: #{tpu_custom_call.1} parent=1 // pred_region
      %s292 = ssub.s32 256, 128
      %293 = vsyncadd [#allocation4], %s292
      %s294 = sshll.u32 [#allocation8], 4
      %s295 = int_to_ptr.vmem [resolvable:$true] %s294
      %300 = dma.vmem_to_hbm [thread:$0]  %s295, 128, %s4, [#allocation4], 128, 128, 8
    $region33: #{tpu_custom_call.1} parent=1 // pred_fallthru
      _
    // Predicated region
    $region34: #{tpu_custom_call.1} parent=1 // pred_check
      _
    $region35: #{tpu_custom_call.1} parent=1 // pred_check_branch
      %302 = sbr.rel (0) target = $region37
    $region36: #{tpu_custom_call.1} parent=1 // pred_region
      %303 = dma.done [#allocation4], 256
    $region37: #{tpu_custom_call.1} parent=1 // pred_fallthru
      _
    %304 = vsyncpa [#allocation3], 1
    %305 = vsyncpa [#allocation6], 1
    %306 = vsyncpa [#allocation4], 1

// kernel: tpu_custom_call.1
$region0: #{tpu_custom_call.1}
  #allocation0 [shape = 'u32[]', space=smem, size = 0x4, offset = 0x4, fixed_abs, tag = 'smem constant byte address 0x4 - core index']
  #allocation1 [shape = 'u32[144,128]{1,0:T(1,128)}', space=vmem, size = 0x12000, scoped, tag = 'internal scratch']
  %s0 = inlined_call_operand.hbm [shape: f32[8,128], index: 0, kind: input, shape index: {}]
  %s1 = inlined_call_operand.hbm [shape: bf16[128,128], index: 1, kind: input, shape index: {}]
  %s2 = inlined_call_operand.vmem [shape: f32[1,128], index: 2, kind: input, shape index: {}]
  %s3 = inlined_call_operand.hbm [shape: bf16[128,128], index: 3, kind: input, shape index: {}]
  %s4 = inlined_call_operand.hbm [shape: f32[8,128], index: 4, kind: output, shape index: {}]
  %s5 = sld [smem:[#allocation0]]
  $region38: #{tpu_custom_call.1} parent=0
    _
  %s7 = ssub.s32 1, %s5
  %s8 = scalar_select 0, %s7, %s5
  $region1: #{tpu_custom_call.1} parent=0
    #allocation2 [shape = 'u8[8192]{0}', space=vmem, size = 0x2000, scoped, tag = 'input window, operand 0, single buffered']
    #allocation3 [shape = 's32[1]{0}', space=sflag, size = 0x4, scoped, tag = 'scoped memory for tpu_custom_call.1']
    #allocation4 [shape = 's32[1]{0}', space=sflag, size = 0x4, scoped, tag = 'scoped memory for tpu_custom_call.1']
    #allocation5 [shape = 'u8[32768]{0}', space=vmem, size = 0x8000, scoped, tag = 'input window, operand 1, single buffered']
    #allocation6 [shape = 's32[1]{0}', space=sflag, size = 0x4, scoped, tag = 'scoped memory for tpu_custom_call.1']
    #allocation7 [shape = 'u8[32768]{0}', space=vmem, size = 0x8000, scoped, tag = 'input window, operand 3, single buffered']
    #allocation8 [shape = 'u8[8192]{0}', space=vmem, size = 0x2000, scoped, tag = 'output window, operand 0, single buffered']
    %9 = vsyncpa [#allocation3], 0
    %10 = vsyncpa [#allocation6], 0
    %11 = vsyncpa [#allocation4], 0
    // Predicated region
    $region2: #{tpu_custom_call.1} parent=1 // pred_check
      _
    $region3: #{tpu_custom_call.1} parent=1 // pred_check_branch
      %13 = sbr.rel (0) target = $region5
    $region4: #{tpu_custom_call.1} parent=1 // pred_region
      %s15 = ssub.s32 256, 128
      %16 = vsyncadd [#allocation3], %s15
      %s17 = sshll.u32 [#allocation2], 4
      %s18 = int_to_ptr.vmem [resolvable:$true] %s17
      %23 = dma.hbm_to_vmem [thread:$0]  %s0, 128, %s18, [#allocation3], 128, 128, 8
    $region5: #{tpu_custom_call.1} parent=1 // pred_fallthru
      _
    // Predicated region
    $region6: #{tpu_custom_call.1} parent=1 // pred_check
      _
    $region7: #{tpu_custom_call.1} parent=1 // pred_check_branch
      %25 = sbr.rel (0) target = $region9
    $region8: #{tpu_custom_call.1} parent=1 // pred_region
      %s27 = ssub.s32 1024, 1024
      %28 = vsyncadd [#allocation6], %s27
      %s29 = sshll.u32 [#allocation5], 4
      %s30 = int_to_ptr.vmem [resolvable:$true] %s29
      %35 = dma.hbm_to_vmem [thread:$0]  %s1, 1024, %s30, [#allocation6], 64, 64, 4
    $region9: #{tpu_custom_call.1} parent=1 // pred_fallthru
      _
    // Predicated region
    $region10: #{tpu_custom_call.1} parent=1 // pred_check
      _
    $region11: #{tpu_custom_call.1} parent=1 // pred_check_branch
      %37 = sbr.rel (0) target = $region13
    $region12: #{tpu_custom_call.1} parent=1 // pred_region
      _
    $region13: #{tpu_custom_call.1} parent=1 // pred_fallthru
      _
    // Predicated region
    $region14: #{tpu_custom_call.1} parent=1 // pred_check
      _
    $region15: #{tpu_custom_call.1} parent=1 // pred_check_branch
      %39 = sbr.rel (0) target = $region17
    $region16: #{tpu_custom_call.1} parent=1 // pred_region
      %s41 = ssub.s32 1024, 1024
      %42 = vsyncadd [#allocation6], %s41
      %s43 = sshll.u32 [#allocation7], 4
      %s44 = int_to_ptr.vmem [resolvable:$true] %s43
      %49 = dma.hbm_to_vmem [thread:$0]  %s3, 1024, %s44, [#allocation6], 64, 64, 4
    $region17: #{tpu_custom_call.1} parent=1 // pred_fallthru
      _
    // Predicated region
    $region18: #{tpu_custom_call.1} parent=1 // pred_check
      _
    $region19: #{tpu_custom_call.1} parent=1 // pred_check_branch
      %51 = sbr.rel (0) target = $region21
    $region20: #{tpu_custom_call.1} parent=1 // pred_region
      %52 = dma.done [#allocation3], 256
    $region21: #{tpu_custom_call.1} parent=1 // pred_fallthru
      _
    // Predicated region
    $region22: #{tpu_custom_call.1} parent=1 // pred_check
      _
    $region23: #{tpu_custom_call.1} parent=1 // pred_check_branch
      %54 = sbr.rel (0) target = $region25
    $region24: #{tpu_custom_call.1} parent=1 // pred_region
      %55 = dma.done [#allocation6], 1024
    $region25: #{tpu_custom_call.1} parent=1 // pred_fallthru
      _
    // Predicated region
    $region26: #{tpu_custom_call.1} parent=1 // pred_check
      _
    $region27: #{tpu_custom_call.1} parent=1 // pred_check_branch
      %57 = sbr.rel (0) target = $region29
    $region28: #{tpu_custom_call.1} parent=1 // pred_region
      %58 = dma.done [#allocation6], 1024
    $region29: #{tpu_custom_call.1} parent=1 // pred_fallthru
      _
    %v60 = vld [vmem:[#allocation2] sm:$0xff]
    %v61 = vld [vmem:[#allocation2 + $0x8] sm:$0xff]
    %v62 = vpack.c.bf16 %v61, %v60
    %v63 = vld [vmem:[#allocation5] sm:$0xf]
    %v64 = vld [vmem:[#allocation5 + $0x4] sm:$0xf]
    %v65 = vld [vmem:[#allocation5 + $0x8] sm:$0xf]
    %v66 = vld [vmem:[#allocation5 + $0xc] sm:$0xf]
    %v67 = vld [vmem:[#allocation5 + $0x10] sm:$0xf]
    %v68 = vld [vmem:[#allocation5 + $0x14] sm:$0xf]
    %v69 = vld [vmem:[#allocation5 + $0x18] sm:$0xf]
    %v70 = vld [vmem:[#allocation5 + $0x1c] sm:$0xf]
    %v71 = vld [vmem:[#allocation5 + $0x20] sm:$0xf]
    %v72 = vld [vmem:[#allocation5 + $0x24] sm:$0xf]
    %v73 = vld [vmem:[#allocation5 + $0x28] sm:$0xf]
    %v74 = vld [vmem:[#allocation5 + $0x2c] sm:$0xf]
    %v75 = vld [vmem:[#allocation5 + $0x30] sm:$0xf]
    %v76 = vld [vmem:[#allocation5 + $0x34] sm:$0xf]
    %v77 = vld [vmem:[#allocation5 + $0x38] sm:$0xf]
    %v78 = vld [vmem:[#allocation5 + $0x3c] sm:$0xf]
    %v79 = vld [vmem:[%s2] sm:$0x1]
    %v81 = vlaneseq
    %v82 = vshrl.u32 %v81, 7
    %v83 = vsub.s32 0, %v82
    %v84 = vrot.slane %v79, %v83
    %v102 = vunpack.c.l.b16 %v63
    %v103 = vunpack.c.l.b16 %v64
    %v104 = vunpack.c.l.b16 %v65
    %v105 = vunpack.c.l.b16 %v66
    %v106 = vunpack.c.l.b16 %v67
    %v107 = vunpack.c.l.b16 %v68
    %v108 = vunpack.c.l.b16 %v69
    %v109 = vunpack.c.l.b16 %v70
    %v110 = vunpack.c.l.b16 %v71
    %v111 = vunpack.c.l.b16 %v72
    %v112 = vunpack.c.l.b16 %v73
    %v113 = vunpack.c.l.b16 %v74
    %v114 = vunpack.c.l.b16 %v75
    %v115 = vunpack.c.l.b16 %v76
    %v116 = vunpack.c.l.b16 %v77
    %v117 = vunpack.c.l.b16 %v78
    %v118 = vpack.c.b16 %v103, %v102
    %v119 = vpack.c.b16 %v105, %v104
    %v120 = vpack.c.b16 %v107, %v106
    %v121 = vpack.c.b16 %v109, %v108
    %v122 = vpack.c.b16 %v111, %v110
    %v123 = vpack.c.b16 %v113, %v112
    %v124 = vpack.c.b16 %v115, %v114
    %v125 = vpack.c.b16 %v117, %v116
    %134 = vmatprep.subr.bf16.mxu0 0
    %135 = vmatpush1.bf16.msra.mxu0 %v118
    %136 = vmatprep.subr.bf16.mxu0 0
    %137 = vmatpush1.bf16.msra.mxu0 %v119
    %138 = vmatprep.subr.bf16.mxu0 0
    %139 = vmatpush1.bf16.msra.mxu0 %v120
    %140 = vmatprep.subr.bf16.mxu0 0
    %141 = vmatpush1.bf16.msra.mxu0 %v121
    %142 = vmatprep.subr.bf16.mxu0 0
    %143 = vmatpush1.bf16.msra.mxu0 %v122
    %144 = vmatprep.subr.bf16.mxu0 0
    %145 = vmatpush1.bf16.msra.mxu0 %v123
    %146 = vmatprep.subr.bf16.mxu0 0
    %147 = vmatpush1.bf16.msra.mxu0 %v124
    %148 = vmatprep.subr.bf16.mxu0 0
    %149 = vmatpush1.bf16.msra.mxu0 %v125
    %150 = vmatprep.subr.bf16.mxu0 0
    %151 = vmatpush1.bf16.msra.mxu0 0
    %152 = vmatprep.subr.bf16.mxu0 0
    %153 = vmatpush1.bf16.msra.mxu0 0
    %154 = vmatprep.subr.bf16.mxu0 0
    %155 = vmatpush1.bf16.msra.mxu0 0
    %156 = vmatprep.subr.bf16.mxu0 0
    %157 = vmatpush1.bf16.msra.mxu0 0
    %158 = vmatprep.subr.bf16.mxu0 0
    %159 = vmatpush1.bf16.msra.mxu0 0
    %160 = vmatprep.subr.bf16.mxu0 0
    %161 = vmatpush1.bf16.msra.mxu0 0
    %162 = vmatprep.subr.bf16.mxu0 0
    %163 = vmatpush1.bf16.msra.mxu0 0
    %164 = vmatprep.subr.bf16.mxu0 0
    %165 = vmatpush1.bf16.msra.mxu0 0
    %166 = vmatprep.mubr.bf16.mxu0 0
    %167 = vmatmul.mubr.bf16.gmra.mrb[0].mxu0 %v62
    %v168 = vpop.f32.mrb[0].mxu0
    %v169 = vadd.f32 %v84, %v168
    %v170 = vpop.f32.mrb[0].mxu0
    %v171 = vpop.f32.mrb[0].mxu0
    %v172 = vadd.f32 %v84, %v171
    %v173 = vpop.f32.mrb[0].mxu0
    %174 = vdwg.mxu0
    %vm175 = vcmp.gt.f32.partialorder %v169, 0.0
    %vm176 = vcmp.gt.f32.partialorder %v172, 0.0
    %v177 = vmul.f32 %v169, 0.01
    %v178 = vmul.f32 %v172, 0.01
    %v179 = vsel %vm175, %v169, %v177
    %v180 = vsel %vm176, %v172, %v178
    %v181 = vpack.c.bf16 %v180, %v179
    %v182 = vld [vmem:[#allocation7] sm:$0xf]
    %v183 = vld [vmem:[#allocation7 + $0x4] sm:$0xf]
    %v184 = vld [vmem:[#allocation7 + $0x8] sm:$0xf]
    %v185 = vld [vmem:[#allocation7 + $0xc] sm:$0xf]
    %v186 = vld [vmem:[#allocation7 + $0x10] sm:$0xf]
    %v187 = vld [vmem:[#allocation7 + $0x14] sm:$0xf]
    %v188 = vld [vmem:[#allocation7 + $0x18] sm:$0xf]
    %v189 = vld [vmem:[#allocation7 + $0x1c] sm:$0xf]
    %v190 = vld [vmem:[#allocation7 + $0x20] sm:$0xf]
    %v191 = vld [vmem:[#allocation7 + $0x24] sm:$0xf]
    %v192 = vld [vmem:[#allocation7 + $0x28] sm:$0xf]
    %v193 = vld [vmem:[#allocation7 + $0x2c] sm:$0xf]
    %v194 = vld [vmem:[#allocation7 + $0x30] sm:$0xf]
    %v195 = vld [vmem:[#allocation7 + $0x34] sm:$0xf]
    %v196 = vld [vmem:[#allocation7 + $0x38] sm:$0xf]
    %v197 = vld [vmem:[#allocation7 + $0x3c] sm:$0xf]
    %v214 = vunpack.c.l.b16 %v182
    %v215 = vunpack.c.l.b16 %v183
    %v216 = vunpack.c.l.b16 %v184
    %v217 = vunpack.c.l.b16 %v185
    %v218 = vunpack.c.l.b16 %v186
    %v219 = vunpack.c.l.b16 %v187
    %v220 = vunpack.c.l.b16 %v188
    %v221 = vunpack.c.l.b16 %v189
    %v222 = vunpack.c.l.b16 %v190
    %v223 = vunpack.c.l.b16 %v191
    %v224 = vunpack.c.l.b16 %v192
    %v225 = vunpack.c.l.b16 %v193
    %v226 = vunpack.c.l.b16 %v194
    %v227 = vunpack.c.l.b16 %v195
    %v228 = vunpack.c.l.b16 %v196
    %v229 = vunpack.c.l.b16 %v197
    %v230 = vpack.c.b16 %v215, %v214
    %v231 = vpack.c.b16 %v217, %v216
    %v232 = vpack.c.b16 %v219, %v218
    %v233 = vpack.c.b16 %v221, %v220
    %v234 = vpack.c.b16 %v223, %v222
    %v235 = vpack.c.b16 %v225, %v224
    %v236 = vpack.c.b16 %v227, %v226
    %v237 = vpack.c.b16 %v229, %v228
    %246 = vmatprep.subr.bf16.mxu0 0
    %247 = vmatpush1.bf16.msra.mxu0 %v230
    %248 = vmatprep.subr.bf16.mxu0 0
    %249 = vmatpush1.bf16.msra.mxu0 %v231
    %250 = vmatprep.subr.bf16.mxu0 0
    %251 = vmatpush1.bf16.msra.mxu0 %v232
    %252 = vmatprep.subr.bf16.mxu0 0
    %253 = vmatpush1.bf16.msra.mxu0 %v233
    %254 = vmatprep.subr.bf16.mxu0 0
    %255 = vmatpush1.bf16.msra.mxu0 %v234
    %256 = vmatprep.subr.bf16.mxu0 0
    %257 = vmatpush1.bf16.msra.mxu0 %v235
    %258 = vmatprep.subr.bf16.mxu0 0
    %259 = vmatpush1.bf16.msra.mxu0 %v236
    %260 = vmatprep.subr.bf16.mxu0 0
    %261 = vmatpush1.bf16.msra.mxu0 %v237
    %262 = vmatprep.subr.bf16.mxu0 0
    %263 = vmatpush1.bf16.msra.mxu0 0
    %264 = vmatprep.subr.bf16.mxu0 0
    %265 = vmatpush1.bf16.msra.mxu0 0
    %266 = vmatprep.subr.bf16.mxu0 0
    %267 = vmatpush1.bf16.msra.mxu0 0
    %268 = vmatprep.subr.bf16.mxu0 0
    %269 = vmatpush1.bf16.msra.mxu0 0
    %270 = vmatprep.subr.bf16.mxu0 0
    %271 = vmatpush1.bf16.msra.mxu0 0
    %272 = vmatprep.subr.bf16.mxu0 0
    %273 = vmatpush1.bf16.msra.mxu0 0
    %274 = vmatprep.subr.bf16.mxu0 0
    %275 = vmatpush1.bf16.msra.mxu0 0
    %276 = vmatprep.subr.bf16.mxu0 0
    %277 = vmatpush1.bf16.msra.mxu0 0
    %278 = vmatprep.mubr.bf16.mxu0 0
    %279 = vmatmul.mubr.bf16.gmra.mrb[0].mxu0 %v181
    %v280 = vpop.f32.mrb[0].mxu0
    %v281 = vadd.f32 0.0, %v280
    %v282 = vpop.f32.mrb[0].mxu0
    %v283 = vpop.f32.mrb[0].mxu0
    %v284 = vadd.f32 0.0, %v283
    %v285 = vpop.f32.mrb[0].mxu0
    %286 = vdwg.mxu0
    %287 = vst [vmem:[#allocation8] sm:$0xff] %v281
    %288 = vst [vmem:[#allocation8 + $0x8] sm:$0xff] %v284
    // Predicated region
    $region30: #{tpu_custom_call.1} parent=1 // pred_check
      _
    $region31: #{tpu_custom_call.1} parent=1 // pred_check_branch
      %290 = sbr.rel (0) target = $region33
    $region32: #{tpu_custom_call.1} parent=1 // pred_region
      %s292 = ssub.s32 256, 128
      %293 = vsyncadd [#allocation4], %s292
      %s294 = sshll.u32 [#allocation8], 4
      %s295 = int_to_ptr.vmem [resolvable:$true] %s294
      %300 = dma.vmem_to_hbm [thread:$0]  %s295, 128, %s4, [#allocation4], 128, 128, 8
    $region33: #{tpu_custom_call.1} parent=1 // pred_fallthru
      _
    // Predicated region
    $region34: #{tpu_custom_call.1} parent=1 // pred_check
      _
    $region35: #{tpu_custom_call.1} parent=1 // pred_check_branch
      %302 = sbr.rel (0) target = $region37
    $region36: #{tpu_custom_call.1} parent=1 // pred_region
      %303 = dma.done [#allocation4], 256
    $region37: #{tpu_custom_call.1} parent=1 // pred_fallthru
      _
    %304 = vsyncpa [#allocation3], 1
    %305 = vsyncpa [#allocation6], 1
    %306 = vsyncpa [#allocation4], 1

</llo_original>
